<compile_context>
chip_gen: v6e
topology: v6e:2x2x1
jax: 0.10.0
libtpu: 0.0.40
codegen_flags: <defaults>
</compile_context>

<pallas_src>
import math

import jax
import jax.numpy as jnp
from jax.experimental import pallas as pl
from jax.experimental.pallas import tpu as pltpu


def _round_up(x, m):
    return (x + m - 1) // m * m


def _pos_embed_kernel(scale_ref, phase_ref, pos_ref, out_ref):
    # scale_ref/phase_ref: (TILE_D, 1) f32  (resident across the hw grid axis)
    # pos_ref:             (1, TILE_HW) f32
    # out_ref:             (TILE_D, TILE_HW)
    # Row 2i carries (scale=freq[i], phase=0) -> sin(freq[i]*p); row 2i+1
    # carries (freq[i], pi/2) -> cos(freq[i]*p).  Dense tile, one sin per
    # output element; the (1, N) / (D, 1) broadcasts stay in-register (no
    # full-tile temporaries observed) so the binding slot is the sin VALU work.
    args = scale_ref[...] * pos_ref[...] + phase_ref[...]
    out_ref[...] = jnp.sin(args).astype(out_ref.dtype)


def _choose_tiles(D, hw, out_itemsize):
    """Pick (tile_d, tile_hw): lane tile multiple of 128, ~8 MiB output tile,
    and enough grid steps to feed two TensorCores (v7x)."""
    # Channel tile: whole axis unless D is huge (keep a multiple of 8).
    tile_d = D
    if D > 1024:
        for cand in (1024, 512, 256, 128):
            if D % cand == 0:
                tile_d = cand
                break

    rows = max(_round_up(tile_d, 8), 8)

    # Lane tile sized so one output tile is ~8 MiB.  Double-buffered that is
    # ~16-17 MiB of VMEM -- comfortably inside every generation (incl. v7x's
    # 64 MiB) once we request it explicitly via vmem_limit_bytes.
    target_tile_bytes = 8 * 1024 * 1024
    t = target_tile_bytes // (rows * out_itemsize)
    t = max(128, min(t // 128 * 128, 32768))
    t = min(t, _round_up(hw, 128))          # never larger than the hw axis

    # Guarantee >= 4 grid steps when possible so dimension_semantics=
    # ("parallel","parallel") has work to split across v7x's two TensorCores
    # (and the pipeline has something to overlap).
    min_steps = 4
    d_steps = D // tile_d
    if d_steps * pl.cdiv(hw, t) < min_steps:
        want_hw_steps = pl.cdiv(min_steps, d_steps)
        t = max(128, min(t, _round_up(pl.cdiv(hw, want_hw_steps), 128)))
    return tile_d, t


def make_pos_embedder(embedding_dim, temperature=2.7, *, out_dtype=None,
                      min_pallas_elems=64 * 1024):
    """Returns fn(pos_grid: (h, w)) -> (embedding_dim, h, w)."""
    if embedding_dim != 1 and embedding_dim % 2 != 0:
        raise ValueError("embedding_dim must be 1 or even")
    D = embedding_dim
    half = D // 2

    if D > 1:
        freq = jnp.exp(
            -jnp.arange(0, D, 2, dtype=jnp.float32) * (math.log(temperature) / D))
        # Per-output-row scale & phase: row 2i -> sin(freq[i]*p), row 2i+1 -> cos.
        scale = jnp.repeat(freq, 2).reshape(D, 1)
        phase = jnp.tile(jnp.array([0.0, math.pi / 2.0], jnp.float32),
                         half).reshape(D, 1)
    else:
        freq = scale = phase = None

    def forward(pos_grid):
        h, w = pos_grid.shape
        out_dt = pos_grid.dtype if out_dtype is None else jnp.dtype(out_dtype)
        if D == 1:
            return pos_grid.reshape(1, h, w).astype(out_dt)

        hw = h * w
        pos_flat = pos_grid.reshape(1, hw).astype(jnp.float32)

        if D * hw < min_pallas_elems:
            # Tiny problem: one fused XLA expression beats pallas launch overhead.
            a = freq.reshape(half, 1) * pos_flat
            res = jnp.stack([jnp.sin(a), jnp.cos(a)], axis=1).reshape(D, hw)
            return res.astype(out_dt).reshape(D, h, w)

        out_itemsize = jnp.dtype(out_dt).itemsize
        tile_d, tile_hw = _choose_tiles(D, hw, out_itemsize)
        grid = (D // tile_d, pl.cdiv(hw, tile_hw))   # hw innermost: consts resident

        # Explicit scoped-VMEM request: 2 buffers x (out tile + pos tile +
        # scale/phase, padded to vreg tiles) + headroom.
        rows = max(_round_up(tile_d, 8), 8)
        out_tile_bytes = rows * tile_hw * out_itemsize
        pos_tile_bytes = 8 * tile_hw * 4
        const_bytes = 2 * rows * 128 * 4
        vmem_bytes = 2 * (out_tile_bytes + pos_tile_bytes + const_bytes) + (4 << 20)
        vmem_bytes = int(max(vmem_bytes, 16 << 20))

        res = pl.pallas_call(
            _pos_embed_kernel,
            out_shape=jax.ShapeDtypeStruct((D, hw), out_dt),
            grid=grid,
            in_specs=[
                pl.BlockSpec((tile_d, 1), lambda j, i: (j, 0)),   # scale (resident per j)
                pl.BlockSpec((tile_d, 1), lambda j, i: (j, 0)),   # phase (resident per j)
                pl.BlockSpec((1, tile_hw), lambda j, i: (0, i)),  # pos tile
            ],
            out_specs=pl.BlockSpec((tile_d, tile_hw), lambda j, i: (j, i)),
            compiler_params=pltpu.CompilerParams(
                dimension_semantics=("parallel", "parallel"),
                vmem_limit_bytes=vmem_bytes),
            cost_estimate=pl.CostEstimate(
                flops=3 * D * hw,
                transcendentals=D * hw,
                bytes_accessed=D * hw * out_itemsize + 4 * hw + 8 * D * 4),
        )(scale, phase, pos_flat)

        return res.reshape(D, h, w)

    return jax.jit(forward)


def _reference(pos_grid, embedding_dim, temperature=2.7):
    """Pure-JAX replica of the PyTorch forward, for verification."""
    h, w = pos_grid.shape
    if embedding_dim == 1:
        return pos_grid.reshape(1, h, w)
    freq = jnp.exp(-jnp.arange(0, embedding_dim, 2, dtype=jnp.float32)
                   * (math.log(temperature) / embedding_dim)).reshape(-1, 1)
    a = freq * pos_grid.reshape(1, -1).astype(jnp.float32)
    res = jnp.zeros((embedding_dim, h * w), dtype=pos_grid.dtype)
    res = res.at[0::2, :].set(jnp.sin(a).astype(pos_grid.dtype))
    res = res.at[1::2, :].set(jnp.cos(a).astype(pos_grid.dtype))
    return res.reshape(embedding_dim, h, w)


if __name__ == "__main__":
    key = jax.random.PRNGKey(0)
    D = 32

    # min_pallas_elems=0 forces the Pallas path at these small test shapes
    # (the default 64K threshold would route them to the plain-XLA fast path).
    embed = make_pos_embedder(D, temperature=2.7, min_pallas_elems=0)

    # (aligned), (multi-tile hw grid), (ragged hw -> partial final block,
    # masked writeback, no wrapper pad/slice)
    for idx, (h, w) in enumerate([(16, 16), (32, 96), (10, 10)]):
        k = jax.random.fold_in(key, idx)
        pos = jax.random.uniform(k, (h, w), jnp.float32, 0.0, 10.0)
        out = jax.block_until_ready(embed(pos))
        ref = _reference(pos, D, 2.7)
        assert out.shape == (D, h, w), out.shape
        assert out.dtype == pos.dtype, out.dtype
        assert jnp.allclose(out, ref, atol=1e-5, rtol=1e-5), ("mismatch", h, w)

    # embedding_dim == 1 path
    pos = jax.random.uniform(key, (16, 16), jnp.float32, 0.0, 10.0)
    e1 = make_pos_embedder(1)
    assert jnp.allclose(jax.block_until_ready(e1(pos)), pos.reshape(1, 16, 16))

    # Optional bf16 output (v5e store-bandwidth option): compute f32, store bf16.
    ebf = make_pos_embedder(D, out_dtype=jnp.bfloat16, min_pallas_elems=0)
    obf = jax.block_until_ready(ebf(pos))
    assert obf.dtype == jnp.bfloat16
    assert jnp.allclose(obf.astype(jnp.float32), _reference(pos, D, 2.7),
                        atol=2e-2, rtol=2e-2)

    print("KERNEL_OK")
</pallas_src>

<mosaic_0001>
module attributes {stable_mosaic.version = 11 : i64} {
  func.func @_pos_embed_kernel(%arg0: i32, %arg1: i32, %arg2: memref<32x1xf32, #tpu.memory_space<vmem>>, %arg3: memref<32x1xf32, #tpu.memory_space<vmem>>, %arg4: memref<1x128xf32, #tpu.memory_space<vmem>>, %arg5: memref<32x128xf32, #tpu.memory_space<vmem>>) attributes {dimension_semantics = [#tpu.dimension_semantics<parallel>, #tpu.dimension_semantics<parallel>], iteration_bounds = array<i64: 1, 2>, scalar_prefetch = 0 : i64, scratch_operands = 0 : i64, tpu.core_type = #tpu.core_type<tc>, window_params = [{transform_indices = @transform_0, window_bounds = array<i64: 32, 1>}, {transform_indices = @transform_1, window_bounds = array<i64: 32, 1>}, {transform_indices = @transform_2, window_bounds = array<i64: 1, 128>}, {transform_indices = @transform_3, window_bounds = array<i64: 32, 128>}]} {
    %c0 = arith.constant 0 : index
    %c0_0 = arith.constant 0 : index
    %0 = vector.load %arg2[%c0, %c0_0] : memref<32x1xf32, #tpu.memory_space<vmem>>, vector<32x1xf32>
    %c0_1 = arith.constant 0 : index
    %c0_2 = arith.constant 0 : index
    %1 = vector.load %arg4[%c0_1, %c0_2] : memref<1x128xf32, #tpu.memory_space<vmem>>, vector<1x128xf32>
    %2 = vector.broadcast %0 : vector<32x1xf32> to vector<32x128xf32>
    %3 = vector.broadcast %1 : vector<1x128xf32> to vector<32x128xf32>
    %4 = arith.mulf %2, %3 : vector<32x128xf32>
    %c0_3 = arith.constant 0 : index
    %c0_4 = arith.constant 0 : index
    %5 = vector.load %arg3[%c0_3, %c0_4] : memref<32x1xf32, #tpu.memory_space<vmem>>, vector<32x1xf32>
    %6 = vector.broadcast %5 : vector<32x1xf32> to vector<32x128xf32>
    %7 = arith.addf %4, %6 : vector<32x128xf32>
    %8 = math.sin %7 : vector<32x128xf32>
    %c0_5 = arith.constant 0 : index
    %c0_6 = arith.constant 0 : index
    %9 = vector.load %arg5[%c0_5, %c0_6] : memref<32x128xf32, #tpu.memory_space<vmem>>, vector<32x128xf32>
    tpu.vector_store %arg5[%c0_5, %c0_6], %8 {strides = array<i32>} : memref<32x128xf32, #tpu.memory_space<vmem>>, vector<32x128xf32>,
    return
  }
  func.func @transform_0(%arg0: i32, %arg1: i32) -> (i32, i32) {
    %c0_i32 = arith.constant 0 : i32
    %c0_i32_0 = arith.constant 0 : i32
    return %arg0, %c0_i32 : i32, i32
  }
  func.func @transform_1(%arg0: i32, %arg1: i32) -> (i32, i32) {
    %c0_i32 = arith.constant 0 : i32
    %c0_i32_0 = arith.constant 0 : i32
    return %arg0, %c0_i32 : i32, i32
  }
  func.func @transform_2(%arg0: i32, %arg1: i32) -> (i32, i32) {
    %c0_i32 = arith.constant 0 : i32
    %c0_i32_0 = arith.constant 0 : i32
    return %c0_i32, %arg1 : i32, i32
  }
  func.func @transform_3(%arg0: i32, %arg1: i32) -> (i32, i32) {
    %c0_i32 = arith.constant 0 : i32
    return %arg0, %arg1 : i32, i32
  }
}

</mosaic_0001>

<llo_original>
// kernel: forward.1
$region0: #{forward.1}
  #allocation0 [shape = 'u32[]', space=smem, size = 0x4, offset = 0x4, fixed_abs, tag = 'smem constant byte address 0x4 - core index']
  #allocation1 [shape = 'u32[144,128]{1,0:T(1,128)}', space=vmem, size = 0x12000, scoped, tag = 'internal scratch']
  %s0 = inlined_call_operand.hbm [shape: f32[32,1], index: 0, kind: input, shape index: {}]
  %s1 = inlined_call_operand.hbm [shape: f32[32,1], index: 1, kind: input, shape index: {}]
  %s2 = inlined_call_operand.vmem [shape: f32[1,256], index: 2, kind: input, shape index: {}]
  %s3 = inlined_call_operand.vmem [shape: f32[32,256], index: 3, kind: output, shape index: {}]
  %s4 = sld [smem:[#allocation0]]
  $region87: #{forward.1} parent=0
    _
  %s6 = ssub.s32 1, %s4
  %s7 = scalar_select 0, %s6, %s4
  $region1: #{forward.1} parent=0
    #allocation2 [shape = 'u8[16384]{0}', space=vmem, size = 0x4000, scoped, tag = 'input window, operand 0, single buffered']
    #allocation3 [shape = 's32[2]{0}', space=sflag, size = 0x8, scoped, tag = 'scoped memory for forward.1']
    #allocation4 [shape = 'u8[16384]{0}', space=vmem, size = 0x4000, scoped, tag = 'input window, operand 1, single buffered']
    #allocation5 [shape = 's32[1]{0}', space=sflag, size = 0x4, scoped, tag = 'scoped memory for forward.1']
    #allocation6 [shape = 'u8[32768]{0}', space=vmem, size = 0x8000, scoped, tag = 'output window, operand 0']
    %8 = vsyncpa [#allocation3], 0
    %9 = vsyncpa [#allocation5], 0
    loop: start=0, step=1, limit=4
    $region2: #{forward.1} parent=1 // loop_pre_header
      _
    $region3: #{forward.1} parent=1 // loop_header
      %s11 = sphi 0, %s15
      %p12 = scmp.ge.s32.totalorder %s11, 4
      %s18 = sphi 0, %s30
      %s19 = sphi 0, %s26
      %s20 = sphi 0, %s18
      %s21 = sphi 0, %s19
      %s22 = sphi 0, %s20
      %s23 = sphi 0, %s21
      %s33 = sphi 0, %s35
      %s36 = sphi 0, %s33
      %s37 = sphi 0, %s36
      %s53 = sphi 0, %s37
      %s59 = sphi 0, %s61
      %s62 = sphi 0, %s59
      %s63 = sphi 0, %s62
      %s79 = sphi 0, %s63
      %s85 = sphi 0, %s87
      %s88 = sphi 0, %s85
      %s89 = sphi 0, %s88
      %s105 = sphi 0, %s89
      %s113 = sphi 0, %s115
      %s116 = sphi 0, %s113
      %s117 = sphi 0, %s116
      %s133 = sphi 0, %s117
    $region4: #{forward.1} parent=1 // loop_header_branch
      %14 = sbr.rel (%p12) target = $region8
    $region5: #{forward.1} parent=1 // loop_body
      %s16 = ssub.s32 %s11, 1
      %s17 = ssub.s32 %s11, 2
      %s24 = sadd.s32 1, %s19
      %p25 = scmp.ge.s32.totalorder %s24, 2
      %s26 = scalar_select %p25, 0, %s24
      %s27 = sadd.s32 1, %s18
      %s28 = scalar_select %p25, %s27, %s18
      %p29 = scmp.ge.s32.totalorder %s28, 1
      %s30 = scalar_select %p29, 0, %s28
      %s31 = ssub.s32 %s18, %s30
      %p32 = scmp.eq.s32.totalorder %s31, 0
      %s34 = sadd.s32 %s33, 1
      %s35 = scalar_select %p32, %s33, %s34
      %p38 = pneg %p32
      %p39 = scmp.eq.s32.totalorder %s11, 1
      %p40 = por %p38, %p39
      %p41 = scmp.ne.s32.totalorder %s33, %s36
      %p42 = scmp.eq.s32.totalorder %s11, 0
      %p43 = por %p41, %p42
      %p44 = scmp.ne.s32.totalorder %s33, %s36
      %p45 = scmp.eq.s32.totalorder %s16, 1
      %p46 = por %p44, %p45
      %p47 = scmp.ne.s32.totalorder %s36, %s37
      %p48 = scmp.eq.s32.totalorder %s16, 0
      %p49 = por %p47, %p48
      %p50 = scmp.ne.s32.totalorder %s36, %s37
      %p51 = scmp.eq.s32.totalorder %s17, 1
      %p52 = por %p50, %p51
      %p54 = scmp.ne.s32.totalorder %s37, %s53
      %p55 = scmp.eq.s32.totalorder %s17, 0
      %p56 = por %p54, %p55
      %s57 = ssub.s32 %s18, %s30
      %p58 = scmp.eq.s32.totalorder %s57, 0
      %s60 = sadd.s32 %s59, 1
      %s61 = scalar_select %p58, %s59, %s60
      %p64 = pneg %p58
      %p65 = scmp.eq.s32.totalorder %s11, 1
      %p66 = por %p64, %p65
      %p67 = scmp.ne.s32.totalorder %s59, %s62
      %p68 = scmp.eq.s32.totalorder %s11, 0
      %p69 = por %p67, %p68
      %p70 = scmp.ne.s32.totalorder %s59, %s62
      %p71 = scmp.eq.s32.totalorder %s16, 1
      %p72 = por %p70, %p71
      %p73 = scmp.ne.s32.totalorder %s62, %s63
      %p74 = scmp.eq.s32.totalorder %s16, 0
      %p75 = por %p73, %p74
      %p76 = scmp.ne.s32.totalorder %s62, %s63
      %p77 = scmp.eq.s32.totalorder %s17, 1
      %p78 = por %p76, %p77
      %p80 = scmp.ne.s32.totalorder %s63, %s79
      %p81 = scmp.eq.s32.totalorder %s17, 0
      %p82 = por %p80, %p81
      %s83 = ssub.s32 %s19, %s26
      %p84 = scmp.eq.s32.totalorder %s83, 0
      %s86 = sadd.s32 %s85, 1
      %s87 = scalar_select %p84, %s85, %s86
      %p90 = pneg %p84
      %p91 = scmp.eq.s32.totalorder %s11, 1
      %p92 = por %p90, %p91
      %p93 = scmp.ne.s32.totalorder %s85, %s88
      %p94 = scmp.eq.s32.totalorder %s11, 0
      %p95 = por %p93, %p94
      %p96 = scmp.ne.s32.totalorder %s85, %s88
      %p97 = scmp.eq.s32.totalorder %s16, 1
      %p98 = por %p96, %p97
      %p99 = scmp.ne.s32.totalorder %s88, %s89
      %p100 = scmp.eq.s32.totalorder %s16, 0
      %p101 = por %p99, %p100
      %p102 = scmp.ne.s32.totalorder %s88, %s89
      %p103 = scmp.eq.s32.totalorder %s17, 1
      %p104 = por %p102, %p103
      %p106 = scmp.ne.s32.totalorder %s89, %s105
      %p107 = scmp.eq.s32.totalorder %s17, 0
      %p108 = por %p106, %p107
      %s109 = ssub.s32 %s18, %s30
      %s110 = ssub.s32 %s19, %s26
      %s111 = sor.u32 %s109, %s110
      %p112 = scmp.eq.s32.totalorder %s111, 0
      %s114 = sadd.s32 %s113, 1
      %s115 = scalar_select %p112, %s113, %s114
      %p118 = pneg %p112
      %p119 = scmp.eq.s32.totalorder %s11, 1
      %p120 = por %p118, %p119
      %p121 = scmp.ne.s32.totalorder %s113, %s116
      %p122 = scmp.eq.s32.totalorder %s11, 0
      %p123 = por %p121, %p122
      %p124 = scmp.ne.s32.totalorder %s113, %s116
      %p125 = scmp.eq.s32.totalorder %s16, 1
      %p126 = por %p124, %p125
      %p127 = scmp.ne.s32.totalorder %s116, %s117
      %p128 = scmp.eq.s32.totalorder %s16, 0
      %p129 = por %p127, %p128
      %p130 = scmp.ne.s32.totalorder %s116, %s117
      %p131 = scmp.eq.s32.totalorder %s17, 1
      %p132 = por %p130, %p131
      %p134 = scmp.ne.s32.totalorder %s117, %s133
      %p135 = scmp.eq.s32.totalorder %s17, 0
      %p136 = por %p134, %p135
      %p137 = scmp.le.s32.totalorder 1, %s11
      %p138 = scmp.lt.s32.totalorder %s11, 3
      %p139 = pnand %p137, %p138
      %p140 = pneg %p139
      // Predicated region
      $region9: #{forward.1} parent=5 // pred_check
        _
      $region10: #{forward.1} parent=5 // pred_check_branch
        %142 = sbr.rel (%p139) target = $region12
      $region11: #{forward.1} parent=5 // pred_region
        %s143 = ssub.s32 %s11, 1
        // Predicated region
        $region13: #{forward.1} parent=11 // pred_check
          %p144 = pneg %p49
        $region14: #{forward.1} parent=11 // pred_check_branch
          %146 = sbr.rel (%p144) target = $region16
        $region15: #{forward.1} parent=11 // pred_region
          %s147 = smul.u32 4, %s20
          %s149 = ssub.s32 512, 512
          %150 = vsyncadd [#allocation3], %s149
          %s151 = smul.addr %s147, 128
          %s152 = scalar_lea.hbm %s0, %s151
          %s153 = sshll.u32 [#allocation2], 4
          %s154 = int_to_ptr.vmem [resolvable:$true] %s153
          %159 = dma.hbm_to_vmem [thread:$0]  %s152, 512, %s154, [#allocation3], 128, 128, 8
        $region16: #{forward.1} parent=11 // pred_fallthru
          _
        // Predicated region
        $region17: #{forward.1} parent=11 // pred_check
          %p160 = pneg %p75
        $region18: #{forward.1} parent=11 // pred_check_branch
          %162 = sbr.rel (%p160) target = $region20
        $region19: #{forward.1} parent=11 // pred_region
          %s163 = smul.u32 4, %s20
          %s165 = ssub.s32 512, 512
          %166 = vsyncadd [#allocation5], %s165
          %s167 = smul.addr %s163, 128
          %s168 = scalar_lea.hbm %s1, %s167
          %s169 = sshll.u32 [#allocation4], 4
          %s170 = int_to_ptr.vmem [resolvable:$true] %s169
          %175 = dma.hbm_to_vmem [thread:$0]  %s168, 512, %s170, [#allocation5], 128, 128, 8
        $region20: #{forward.1} parent=11 // pred_fallthru
          _
      $region12: #{forward.1} parent=5 // pred_fallthru
        _
      %p176 = scmp.lt.s32.totalorder %s11, 2
      // Predicated region
      $region21: #{forward.1} parent=5 // pred_check
        %p177 = pneg %p176
      $region22: #{forward.1} parent=5 // pred_check_branch
        %179 = sbr.rel (%p177) target = $region24
      $region23: #{forward.1} parent=5 // pred_region
        // Predicated region
        $region25: #{forward.1} parent=23 // pred_check
          %p180 = pneg %p95
        $region26: #{forward.1} parent=23 // pred_check_branch
          %182 = sbr.rel (%p180) target = $region28
        $region27: #{forward.1} parent=23 // pred_region
          %p183 = scmp.lt.s32.totalorder %s19, 1
          %s184 = scalar_select %p183, %s19, 1
          %s185 = scalar_lea.vmem %s2, %s184
        $region28: #{forward.1} parent=23 // pred_fallthru
          _
      $region24: #{forward.1} parent=5 // pred_fallthru
        _
      %p186 = scmp.le.s32.totalorder 1, %s11
      %p187 = scmp.lt.s32.totalorder %s11, 3
      %p188 = pnand %p186, %p187
      %p189 = pneg %p188
      // Predicated region
      $region29: #{forward.1} parent=5 // pred_check
        _
      $region30: #{forward.1} parent=5 // pred_check_branch
        %191 = sbr.rel (%p188) target = $region32
      $region31: #{forward.1} parent=5 // pred_region
        %s192 = ssub.s32 %s11, 1
        // Predicated region
        $region33: #{forward.1} parent=31 // pred_check
          %p193 = pneg %p49
        $region34: #{forward.1} parent=31 // pred_check_branch
          %195 = sbr.rel (%p193) target = $region36
        $region35: #{forward.1} parent=31 // pred_region
          %196 = dma.done [#allocation3], 512
        $region36: #{forward.1} parent=31 // pred_fallthru
          _
        // Predicated region
        $region37: #{forward.1} parent=31 // pred_check
          %p197 = pneg %p75
        $region38: #{forward.1} parent=31 // pred_check_branch
          %199 = sbr.rel (%p197) target = $region40
        $region39: #{forward.1} parent=31 // pred_region
          %200 = dma.done [#allocation5], 512
        $region40: #{forward.1} parent=31 // pred_fallthru
          _
        %p201 = pneg %p49
        %p202 = pneg %p46
        %p203 = pneg %p75
        %p204 = pneg %p72
        %p205 = scmp.lt.s32.totalorder %s21, 1
        %s206 = scalar_select %p205, %s21, 1
        %s207 = scalar_lea.vmem %s2, %s206
        %p208 = pneg %p101
        %p209 = pneg %p98
        %p210 = pneg %p129
        %p211 = pneg %p126
        %s212 = sand.u32 %s116, 1
        %s213 = sand.u32 %s116, 1
        %s214 = smul.addr %s213, 32
        %s215 = scalar_lea.vmem [#allocation6], %s214
        %s216 = smul.u32 4, %s20
        %s217 = smul.u32 4, %s20
        %p218 = scmp.lt.s32.totalorder %s21, 1
        %s219 = scalar_select %p218, %s21, 1
        %s220 = scalar_lea.vmem %s2, %s219
        %s221 = smul.u32 4, %s20
        %v222 = vld [vmem:[#allocation2] sm:$0xff]
        %v223 = vld [vmem:[#allocation2 + $0x8] sm:$0xff]
        %v224 = vld [vmem:[#allocation2 + $0x10] sm:$0xff]
        %v225 = vld [vmem:[#allocation2 + $0x18] sm:$0xff]
        %v226 = vld [vmem:[%s220] sm:$0x1]
        %228 = vset.pattern.permute.xlu0 0
        %229 = vperm.xlu0 %228, %v222
        %v230 = vpop.permute.xlu0 %229
        %233 = vset.pattern.permute.xlu0 0
        %234 = vperm.xlu0 %233, %v223
        %v235 = vpop.permute.xlu0 %234
        %238 = vset.pattern.permute.xlu0 0
        %239 = vperm.xlu0 %238, %v224
        %v240 = vpop.permute.xlu0 %239
        %243 = vset.pattern.permute.xlu0 0
        %244 = vperm.xlu0 %243, %v225
        %v245 = vpop.permute.xlu0 %244
        %v248 = vlaneseq
        %v249 = vshrl.u32 %v248, 7
        %v250 = vsub.s32 0, %v249
        %v251 = vrot.slane %v226, %v250
        %v253 = vmul.f32 %v230, %v251
        %v254 = vmul.f32 %v235, %v251
        %v255 = vmul.f32 %v240, %v251
        %v256 = vmul.f32 %v245, %v251
        %v257 = vld [vmem:[#allocation4] sm:$0xff]
        %v258 = vld [vmem:[#allocation4 + $0x8] sm:$0xff]
        %v259 = vld [vmem:[#allocation4 + $0x10] sm:$0xff]
        %v260 = vld [vmem:[#allocation4 + $0x18] sm:$0xff]
        %262 = vset.pattern.permute.xlu0 0
        %263 = vperm.xlu0 %262, %v257
        %v264 = vpop.permute.xlu0 %263
        %267 = vset.pattern.permute.xlu0 0
        %268 = vperm.xlu0 %267, %v258
        %v269 = vpop.permute.xlu0 %268
        %272 = vset.pattern.permute.xlu0 0
        %273 = vperm.xlu0 %272, %v259
        %v274 = vpop.permute.xlu0 %273
        %277 = vset.pattern.permute.xlu0 0
        %278 = vperm.xlu0 %277, %v260
        %v279 = vpop.permute.xlu0 %278
        %v281 = vadd.f32 %v253, %v264
        %v282 = vadd.f32 %v254, %v269
        %v283 = vadd.f32 %v255, %v274
        %v284 = vadd.f32 %v256, %v279
        %v285 = vand.u32 2147483647, %v281
        %vm286 = vcmp.le.f32.partialorder %v285, 0.7853982
        %vm287 = vcmp.lt.s32.totalorder %v281, 0
        %v288 = vand.u32 %v281, 2139095040
        %v289 = vshrl.u32 %v288, 23
        %v290 = vsub.s32 %v289, 127
        %v291 = vand.u32 2147483647, %v281
        %v292 = vand.u32 %v291, 8388607
        %v293 = vor.u32 %v292, 8388608
        %v294 = vsub.s32 0, %v293
        %v295 = vadd.s32 %v290, 1
        %vm296 = vcmp.gt.s32.totalorder %v295, 0
        %v297 = vsel %vm296, %v295, 0
        %v298 = vshrl.u32 %v297, 5
        %v299 = vand.u32 %v297, 31
        %v300 = vsub.s32 32, %v299
        %v301 = vshrl.u32 683565275, %v300
        %v302 = vshll.u32 683565275, %v299
        %v303 = vshrl.u32 2475754826, %v300
        %v304 = vor.u32 %v302, %v303
        %v305 = vshll.u32 2475754826, %v299
        %v306 = vshrl.u32 2131351028, %v300
        %v307 = vor.u32 %v305, %v306
        %v308 = vshll.u32 2131351028, %v299
        %v309 = vshrl.u32 2102212464, %v300
        %v310 = vor.u32 %v308, %v309
        %v311 = vshll.u32 2102212464, %v299
        %v312 = vshrl.u32 920167782, %v300
        %v313 = vor.u32 %v311, %v312
        %v314 = vshll.u32 920167782, %v299
        %v315 = vshrl.u32 1326507024, %v300
        %v316 = vor.u32 %v314, %v315
        %vm317 = vcmp.lt.s32.totalorder %v298, 1
        %vm318 = vcmp.lt.s32.totalorder %v298, 2
        %vm319 = vcmp.lt.s32.totalorder %v298, 3
        %vm320 = vcmp.lt.s32.totalorder %v298, 4
        %v321 = vsel %vm317, %v301, %v304
        %v322 = vsel %vm320, %v310, 2102212464
        %v323 = vsel %vm319, %v307, %v322
        %v324 = vsel %vm318, %v321, %v323
        %v325 = vsel %vm317, %v304, %v307
        %v326 = vsel %vm320, %v313, 920167782
        %v327 = vsel %vm319, %v310, %v326
        %v328 = vsel %vm318, %v325, %v327
        %v329 = vsel %vm317, %v307, %v310
        %v330 = vsel %vm320, %v316, 1326507024
        %v331 = vsel %vm319, %v313, %v330
        %v332 = vsel %vm318, %v329, %v331
        %v333 = vshll.u32 %v293, 8
        %v334 = vmul.u32.u64.compose %v333, %v332
        %v335 = vextract.low.u32 %v334
        %v336 = vextract.high.u32 %v334
        %v337 = vmul.u32.u64.compose %v333, %v328
        %v338 = vextract.low.u32 %v337
        %v339 = vextract.high.u32 %v337
        %v340 = vmul.u32 %v333, %v324
        %v341 = vadd.s32 %v336, %v338
        %vm342 = vc.u32 %v336, %v338
        %v343 = vadd.s32 %v339, 1
        %v344 = vsel %vm342, %v343, %v339
        %v345 = vadd.s32 %v340, %v344
        %v346 = vadd.s32 %v345, 536870912
        %v347 = vshrl.u32 %v346, 30
        %v348 = vshll.u32 %v347, 30
        %v349 = vsub.s32 %v345, %v348
        %vm350 = vcmp.lt.s32.totalorder %v349, 0
        %v351 = vsub.s32 0, %v349
        %v352 = vsel %vm350, %v351, %v349
        %v353 = vclz %v352
        %v354 = vsub.s32 %v353, 2
        %vm355 = vcmp.gt.s32.totalorder 0, %v354
        %v356 = vsel %vm355, 0, %v354
        %v357 = vsub.s32 32, %v356
        %v358 = vshll.u32 %v349, %v356
        %v359 = vshrl.u32 %v341, %v357
        %v360 = vor.u32 %v358, %v359
        %v361 = vsub.s32 4294967266, %v356
        %v362 = vadd.s32 %v361, 127
        %v363 = vshll.u32 %v362, 23
        %v364 = vor.u32 4788187, %v363
        %v365 = vand.u32 2147483647, %v364
        %v367 = vcvt.s32.f32 %v360
        %v368 = vmul.f32 %v367, %v365
        %v369 = vxor.u32 %v368, 2147483648
        %v370 = vsel %vm287, %v369, %v368
        %v371 = vsub.s32 4, %v347
        %v372 = vsel %vm287, %v371, %v347
        %v373 = vsel %vm286, %v281, %v370
        %v374 = vsel %vm286, 0, %v372
        %v375 = vcosq.f32.pop %v373
        %v376 = vsinq.f32.pop %v373
        %vm377 = vweird.f32 %v281
        %v378 = vadd.s32 %v374, 3
        %v379 = vand.u32 %v378, 3
        %vm380 = vcmp.lt.s32.totalorder %v379, 2
        %vm381 = vcmp.eq.s32.totalorder %v379, 0
        %v382 = vxor.u32 %v376, 2147483648
        %v383 = vsel %vm381, %v375, %v382
        %vm384 = vcmp.eq.s32.totalorder %v379, 2
        %v385 = vxor.u32 %v375, 2147483648
        %v386 = vsel %vm384, %v385, %v376
        %v387 = vsel %vm380, %v383, %v386
        %v388 = vsel %vm377, nan, %v387
        %v389 = vand.u32 2147483647, %v282
        %vm390 = vcmp.le.f32.partialorder %v389, 0.7853982
        %vm391 = vcmp.lt.s32.totalorder %v282, 0
        %v392 = vand.u32 %v282, 2139095040
        %v393 = vshrl.u32 %v392, 23
        %v394 = vsub.s32 %v393, 127
        %v395 = vand.u32 2147483647, %v282
        %v396 = vand.u32 %v395, 8388607
        %v397 = vor.u32 %v396, 8388608
        %v398 = vsub.s32 0, %v397
        %v399 = vadd.s32 %v394, 1
        %vm400 = vcmp.gt.s32.totalorder %v399, 0
        %v401 = vsel %vm400, %v399, 0
        %v402 = vshrl.u32 %v401, 5
        %v403 = vand.u32 %v401, 31
        %v404 = vsub.s32 32, %v403
        %v405 = vshrl.u32 683565275, %v404
        %v406 = vshll.u32 683565275, %v403
        %v407 = vshrl.u32 2475754826, %v404
        %v408 = vor.u32 %v406, %v407
        %v409 = vshll.u32 2475754826, %v403
        %v410 = vshrl.u32 2131351028, %v404
        %v411 = vor.u32 %v409, %v410
        %v412 = vshll.u32 2131351028, %v403
        %v413 = vshrl.u32 2102212464, %v404
        %v414 = vor.u32 %v412, %v413
        %v415 = vshll.u32 2102212464, %v403
        %v416 = vshrl.u32 920167782, %v404
        %v417 = vor.u32 %v415, %v416
        %v418 = vshll.u32 920167782, %v403
        %v419 = vshrl.u32 1326507024, %v404
        %v420 = vor.u32 %v418, %v419
        %vm421 = vcmp.lt.s32.totalorder %v402, 1
        %vm422 = vcmp.lt.s32.totalorder %v402, 2
        %vm423 = vcmp.lt.s32.totalorder %v402, 3
        %vm424 = vcmp.lt.s32.totalorder %v402, 4
        %v425 = vsel %vm421, %v405, %v408
        %v426 = vsel %vm424, %v414, 2102212464
        %v427 = vsel %vm423, %v411, %v426
        %v428 = vsel %vm422, %v425, %v427
        %v429 = vsel %vm421, %v408, %v411
        %v430 = vsel %vm424, %v417, 920167782
        %v431 = vsel %vm423, %v414, %v430
        %v432 = vsel %vm422, %v429, %v431
        %v433 = vsel %vm421, %v411, %v414
        %v434 = vsel %vm424, %v420, 1326507024
        %v435 = vsel %vm423, %v417, %v434
        %v436 = vsel %vm422, %v433, %v435
        %v437 = vshll.u32 %v397, 8
        %v438 = vmul.u32.u64.compose %v437, %v436
        %v439 = vextract.low.u32 %v438
        %v440 = vextract.high.u32 %v438
        %v441 = vmul.u32.u64.compose %v437, %v432
        %v442 = vextract.low.u32 %v441
        %v443 = vextract.high.u32 %v441
        %v444 = vmul.u32 %v437, %v428
        %v445 = vadd.s32 %v440, %v442
        %vm446 = vc.u32 %v440, %v442
        %v447 = vadd.s32 %v443, 1
        %v448 = vsel %vm446, %v447, %v443
        %v449 = vadd.s32 %v444, %v448
        %v450 = vadd.s32 %v449, 536870912
        %v451 = vshrl.u32 %v450, 30
        %v452 = vshll.u32 %v451, 30
        %v453 = vsub.s32 %v449, %v452
        %vm454 = vcmp.lt.s32.totalorder %v453, 0
        %v455 = vsub.s32 0, %v453
        %v456 = vsel %vm454, %v455, %v453
        %v457 = vclz %v456
        %v458 = vsub.s32 %v457, 2
        %vm459 = vcmp.gt.s32.totalorder 0, %v458
        %v460 = vsel %vm459, 0, %v458
        %v461 = vsub.s32 32, %v460
        %v462 = vshll.u32 %v453, %v460
        %v463 = vshrl.u32 %v445, %v461
        %v464 = vor.u32 %v462, %v463
        %v465 = vsub.s32 4294967266, %v460
        %v466 = vadd.s32 %v465, 127
        %v467 = vshll.u32 %v466, 23
        %v468 = vor.u32 4788187, %v467
        %v469 = vand.u32 2147483647, %v468
        %v471 = vcvt.s32.f32 %v464
        %v472 = vmul.f32 %v471, %v469
        %v473 = vxor.u32 %v472, 2147483648
        %v474 = vsel %vm391, %v473, %v472
        %v475 = vsub.s32 4, %v451
        %v476 = vsel %vm391, %v475, %v451
        %v477 = vsel %vm390, %v282, %v474
        %v478 = vsel %vm390, 0, %v476
        %v479 = vcosq.f32.pop %v477
        %v480 = vsinq.f32.pop %v477
        %vm481 = vweird.f32 %v282
        %v482 = vadd.s32 %v478, 3
        %v483 = vand.u32 %v482, 3
        %vm484 = vcmp.lt.s32.totalorder %v483, 2
        %vm485 = vcmp.eq.s32.totalorder %v483, 0
        %v486 = vxor.u32 %v480, 2147483648
        %v487 = vsel %vm485, %v479, %v486
        %vm488 = vcmp.eq.s32.totalorder %v483, 2
        %v489 = vxor.u32 %v479, 2147483648
        %v490 = vsel %vm488, %v489, %v480
        %v491 = vsel %vm484, %v487, %v490
        %v492 = vsel %vm481, nan, %v491
        %v493 = vand.u32 2147483647, %v283
        %vm494 = vcmp.le.f32.partialorder %v493, 0.7853982
        %vm495 = vcmp.lt.s32.totalorder %v283, 0
        %v496 = vand.u32 %v283, 2139095040
        %v497 = vshrl.u32 %v496, 23
        %v498 = vsub.s32 %v497, 127
        %v499 = vand.u32 2147483647, %v283
        %v500 = vand.u32 %v499, 8388607
        %v501 = vor.u32 %v500, 8388608
        %v502 = vsub.s32 0, %v501
        %v503 = vadd.s32 %v498, 1
        %vm504 = vcmp.gt.s32.totalorder %v503, 0
        %v505 = vsel %vm504, %v503, 0
        %v506 = vshrl.u32 %v505, 5
        %v507 = vand.u32 %v505, 31
        %v508 = vsub.s32 32, %v507
        %v509 = vshrl.u32 683565275, %v508
        %v510 = vshll.u32 683565275, %v507
        %v511 = vshrl.u32 2475754826, %v508
        %v512 = vor.u32 %v510, %v511
        %v513 = vshll.u32 2475754826, %v507
        %v514 = vshrl.u32 2131351028, %v508
        %v515 = vor.u32 %v513, %v514
        %v516 = vshll.u32 2131351028, %v507
        %v517 = vshrl.u32 2102212464, %v508
        %v518 = vor.u32 %v516, %v517
        %v519 = vshll.u32 2102212464, %v507
        %v520 = vshrl.u32 920167782, %v508
        %v521 = vor.u32 %v519, %v520
        %v522 = vshll.u32 920167782, %v507
        %v523 = vshrl.u32 1326507024, %v508
        %v524 = vor.u32 %v522, %v523
        %vm525 = vcmp.lt.s32.totalorder %v506, 1
        %vm526 = vcmp.lt.s32.totalorder %v506, 2
        %vm527 = vcmp.lt.s32.totalorder %v506, 3
        %vm528 = vcmp.lt.s32.totalorder %v506, 4
        %v529 = vsel %vm525, %v509, %v512
        %v530 = vsel %vm528, %v518, 2102212464
        %v531 = vsel %vm527, %v515, %v530
        %v532 = vsel %vm526, %v529, %v531
        %v533 = vsel %vm525, %v512, %v515
        %v534 = vsel %vm528, %v521, 920167782
        %v535 = vsel %vm527, %v518, %v534
        %v536 = vsel %vm526, %v533, %v535
        %v537 = vsel %vm525, %v515, %v518
        %v538 = vsel %vm528, %v524, 1326507024
        %v539 = vsel %vm527, %v521, %v538
        %v540 = vsel %vm526, %v537, %v539
        %v541 = vshll.u32 %v501, 8
        %v542 = vmul.u32.u64.compose %v541, %v540
        %v543 = vextract.low.u32 %v542
        %v544 = vextract.high.u32 %v542
        %v545 = vmul.u32.u64.compose %v541, %v536
        %v546 = vextract.low.u32 %v545
        %v547 = vextract.high.u32 %v545
        %v548 = vmul.u32 %v541, %v532
        %v549 = vadd.s32 %v544, %v546
        %vm550 = vc.u32 %v544, %v546
        %v551 = vadd.s32 %v547, 1
        %v552 = vsel %vm550, %v551, %v547
        %v553 = vadd.s32 %v548, %v552
        %v554 = vadd.s32 %v553, 536870912
        %v555 = vshrl.u32 %v554, 30
        %v556 = vshll.u32 %v555, 30
        %v557 = vsub.s32 %v553, %v556
        %vm558 = vcmp.lt.s32.totalorder %v557, 0
        %v559 = vsub.s32 0, %v557
        %v560 = vsel %vm558, %v559, %v557
        %v561 = vclz %v560
        %v562 = vsub.s32 %v561, 2
        %vm563 = vcmp.gt.s32.totalorder 0, %v562
        %v564 = vsel %vm563, 0, %v562
        %v565 = vsub.s32 32, %v564
        %v566 = vshll.u32 %v557, %v564
        %v567 = vshrl.u32 %v549, %v565
        %v568 = vor.u32 %v566, %v567
        %v569 = vsub.s32 4294967266, %v564
        %v570 = vadd.s32 %v569, 127
        %v571 = vshll.u32 %v570, 23
        %v572 = vor.u32 4788187, %v571
        %v573 = vand.u32 2147483647, %v572
        %v575 = vcvt.s32.f32 %v568
        %v576 = vmul.f32 %v575, %v573
        %v577 = vxor.u32 %v576, 2147483648
        %v578 = vsel %vm495, %v577, %v576
        %v579 = vsub.s32 4, %v555
        %v580 = vsel %vm495, %v579, %v555
        %v581 = vsel %vm494, %v283, %v578
        %v582 = vsel %vm494, 0, %v580
        %v583 = vcosq.f32.pop %v581
        %v584 = vsinq.f32.pop %v581
        %vm585 = vweird.f32 %v283
        %v586 = vadd.s32 %v582, 3
        %v587 = vand.u32 %v586, 3
        %vm588 = vcmp.lt.s32.totalorder %v587, 2
        %vm589 = vcmp.eq.s32.totalorder %v587, 0
        %v590 = vxor.u32 %v584, 2147483648
        %v591 = vsel %vm589, %v583, %v590
        %vm592 = vcmp.eq.s32.totalorder %v587, 2
        %v593 = vxor.u32 %v583, 2147483648
        %v594 = vsel %vm592, %v593, %v584
        %v595 = vsel %vm588, %v591, %v594
        %v596 = vsel %vm585, nan, %v595
        %v597 = vand.u32 2147483647, %v284
        %vm598 = vcmp.le.f32.partialorder %v597, 0.7853982
        %vm599 = vcmp.lt.s32.totalorder %v284, 0
        %v600 = vand.u32 %v284, 2139095040
        %v601 = vshrl.u32 %v600, 23
        %v602 = vsub.s32 %v601, 127
        %v603 = vand.u32 2147483647, %v284
        %v604 = vand.u32 %v603, 8388607
        %v605 = vor.u32 %v604, 8388608
        %v606 = vsub.s32 0, %v605
        %v607 = vadd.s32 %v602, 1
        %vm608 = vcmp.gt.s32.totalorder %v607, 0
        %v609 = vsel %vm608, %v607, 0
        %v610 = vshrl.u32 %v609, 5
        %v611 = vand.u32 %v609, 31
        %v612 = vsub.s32 32, %v611
        %v613 = vshrl.u32 683565275, %v612
        %v614 = vshll.u32 683565275, %v611
        %v615 = vshrl.u32 2475754826, %v612
        %v616 = vor.u32 %v614, %v615
        %v617 = vshll.u32 2475754826, %v611
        %v618 = vshrl.u32 2131351028, %v612
        %v619 = vor.u32 %v617, %v618
        %v620 = vshll.u32 2131351028, %v611
        %v621 = vshrl.u32 2102212464, %v612
        %v622 = vor.u32 %v620, %v621
        %v623 = vshll.u32 2102212464, %v611
        %v624 = vshrl.u32 920167782, %v612
        %v625 = vor.u32 %v623, %v624
        %v626 = vshll.u32 920167782, %v611
        %v627 = vshrl.u32 1326507024, %v612
        %v628 = vor.u32 %v626, %v627
        %vm629 = vcmp.lt.s32.totalorder %v610, 1
        %vm630 = vcmp.lt.s32.totalorder %v610, 2
        %vm631 = vcmp.lt.s32.totalorder %v610, 3
        %vm632 = vcmp.lt.s32.totalorder %v610, 4
        %v633 = vsel %vm629, %v613, %v616
        %v634 = vsel %vm632, %v622, 2102212464
        %v635 = vsel %vm631, %v619, %v634
        %v636 = vsel %vm630, %v633, %v635
        %v637 = vsel %vm629, %v616, %v619
        %v638 = vsel %vm632, %v625, 920167782
        %v639 = vsel %vm631, %v622, %v638
        %v640 = vsel %vm630, %v637, %v639
        %v641 = vsel %vm629, %v619, %v622
        %v642 = vsel %vm632, %v628, 1326507024
        %v643 = vsel %vm631, %v625, %v642
        %v644 = vsel %vm630, %v641, %v643
        %v645 = vshll.u32 %v605, 8
        %v646 = vmul.u32.u64.compose %v645, %v644
        %v647 = vextract.low.u32 %v646
        %v648 = vextract.high.u32 %v646
        %v649 = vmul.u32.u64.compose %v645, %v640
        %v650 = vextract.low.u32 %v649
        %v651 = vextract.high.u32 %v649
        %v652 = vmul.u32 %v645, %v636
        %v653 = vadd.s32 %v648, %v650
        %vm654 = vc.u32 %v648, %v650
        %v655 = vadd.s32 %v651, 1
        %v656 = vsel %vm654, %v655, %v651
        %v657 = vadd.s32 %v652, %v656
        %v658 = vadd.s32 %v657, 536870912
        %v659 = vshrl.u32 %v658, 30
        %v660 = vshll.u32 %v659, 30
        %v661 = vsub.s32 %v657, %v660
        %vm662 = vcmp.lt.s32.totalorder %v661, 0
        %v663 = vsub.s32 0, %v661
        %v664 = vsel %vm662, %v663, %v661
        %v665 = vclz %v664
        %v666 = vsub.s32 %v665, 2
        %vm667 = vcmp.gt.s32.totalorder 0, %v666
        %v668 = vsel %vm667, 0, %v666
        %v669 = vsub.s32 32, %v668
        %v670 = vshll.u32 %v661, %v668
        %v671 = vshrl.u32 %v653, %v669
        %v672 = vor.u32 %v670, %v671
        %v673 = vsub.s32 4294967266, %v668
        %v674 = vadd.s32 %v673, 127
        %v675 = vshll.u32 %v674, 23
        %v676 = vor.u32 4788187, %v675
        %v677 = vand.u32 2147483647, %v676
        %v679 = vcvt.s32.f32 %v672
        %v680 = vmul.f32 %v679, %v677
        %v681 = vxor.u32 %v680, 2147483648
        %v682 = vsel %vm599, %v681, %v680
        %v683 = vsub.s32 4, %v659
        %v684 = vsel %vm599, %v683, %v659
        %v685 = vsel %vm598, %v284, %v682
        %v686 = vsel %vm598, 0, %v684
        %v687 = vcosq.f32.pop %v685
        %v688 = vsinq.f32.pop %v685
        %vm689 = vweird.f32 %v284
        %v690 = vadd.s32 %v686, 3
        %v691 = vand.u32 %v690, 3
        %vm692 = vcmp.lt.s32.totalorder %v691, 2
        %vm693 = vcmp.eq.s32.totalorder %v691, 0
        %v694 = vxor.u32 %v688, 2147483648
        %v695 = vsel %vm693, %v687, %v694
        %vm696 = vcmp.eq.s32.totalorder %v691, 2
        %v697 = vxor.u32 %v687, 2147483648
        %v698 = vsel %vm696, %v697, %v688
        %v699 = vsel %vm692, %v695, %v698
        %v700 = vsel %vm689, nan, %v699
        %701 = vst [vmem:[%s215] sm:$0xff] %v388
        %702 = vst [vmem:[%s215 + $0x8] sm:$0xff] %v492
        %703 = vst [vmem:[%s215 + $0x10] sm:$0xff] %v596
        %704 = vst [vmem:[%s215 + $0x18] sm:$0xff] %v700
        %s705 = sand.u32 %s116, 1
        %s706 = sand.u32 %s116, 1
        %s707 = smul.addr %s706, 32
        %s708 = scalar_lea.vmem [#allocation6], %s707
        // Predicated region
        $region41: #{forward.1} parent=31 // pred_check
          %p709 = pneg %p126
        $region42: #{forward.1} parent=31 // pred_check_branch
          %711 = sbr.rel (%p709) target = $region44
        $region43: #{forward.1} parent=31 // pred_region
          %s712 = smul.u32 4, %s20
          %s713 = smul.addr %s712, 2
          %s714 = sadd.s32 %s21, %s713
          %s715 = smul.addr %s714, 8
          %s716 = scalar_lea.vmem %s3, %s715
          // Predicated region
          $region45: #{forward.1} parent=43 // pred_check
            _
          $region46: #{forward.1} parent=43 // pred_check_branch
            %718 = sbr.rel (0) target = $region48
          $region47: #{forward.1} parent=43 // pred_region
            // Predicated region
            $region49: #{forward.1} parent=47 // pred_check
              _
            $region50: #{forward.1} parent=47 // pred_check_branch
              %720 = sbr.rel (0) target = $region52
            $region51: #{forward.1} parent=47 // pred_region
              // Predicated region
              $region64: #{forward.1} parent=51 // pred_check
                _
              $region65: #{forward.1} parent=51 // pred_check_branch
                %742 = sbr.rel (0) target = $region67
              $region66: #{forward.1} parent=51 // pred_region
                loop: start=0, step=1, limit=1
                $region68: #{forward.1} parent=66 // loop_pre_header
                  _
                $region69: #{forward.1} parent=66 // loop_header
                  %s744 = sphi 0, %s748
                  %p745 = scmp.ge.s32.totalorder %s744, 1
                  %s749 = sphi %s708, %s708
                  %s750 = sphi %s716, %s716
                $region70: #{forward.1} parent=66 // loop_header_branch
                  %747 = sbr.rel (%p745) target = $region74
                $region71: #{forward.1} parent=66 // loop_body
                  %v751 = vld [vmem:[%s749] sm:$0xff]
                  %752 = vst [vmem:[%s750] sm:$0xff] %v751
                  %v753 = vld [vmem:[%s749 + $0x8] sm:$0xff]
                  %754 = vst [vmem:[%s750 + $0x10] sm:$0xff] %v753
                  %v755 = vld [vmem:[%s749 + $0x10] sm:$0xff]
                  %756 = vst [vmem:[%s750 + $0x20] sm:$0xff] %v755
                  %v757 = vld [vmem:[%s749 + $0x18] sm:$0xff]
                  %758 = vst [vmem:[%s750 + $0x30] sm:$0xff] %v757
                $region72: #{forward.1} parent=66 // loop_footer
                  %s748 = sadd.s32 1, %s744
                $region73: #{forward.1} parent=66 // loop_footer_branch
                  %743 = sbr.rel target = $region69
                $region74: #{forward.1} parent=66 // loop_exit
                  _
              $region67: #{forward.1} parent=51 // pred_fallthru
                _
              // Predicated region
              $region75: #{forward.1} parent=51 // pred_check
                _
              $region76: #{forward.1} parent=51 // pred_check_branch
                %760 = sbr.rel target = $region78
              $region77: #{forward.1} parent=51 // pred_region
                _
              $region78: #{forward.1} parent=51 // pred_fallthru
                _
            $region52: #{forward.1} parent=47 // pred_fallthru
              _
            // Predicated region
            $region53: #{forward.1} parent=47 // pred_check
              _
            $region54: #{forward.1} parent=47 // pred_check_branch
              %722 = sbr.rel target = $region56
            $region55: #{forward.1} parent=47 // pred_region
              %s724 = ssub.s32 256, 1
              loop: start=0, step=1, limit=1
              $region57: #{forward.1} parent=55 // loop_pre_header
                _
              $region58: #{forward.1} parent=55 // loop_header
                %s726 = sphi 0, %s730
                %p727 = scmp.ge.s32.totalorder %s726, 1
                %s731 = sphi %s708, %s708
                %s732 = sphi %s716, %s716
              $region59: #{forward.1} parent=55 // loop_header_branch
                %729 = sbr.rel (%p727) target = $region63
              $region60: #{forward.1} parent=55 // loop_body
                %v733 = vld [vmem:[%s731] sm:%s724]
                %734 = vst [vmem:[%s732] sm:%s724] %v733
                %v735 = vld [vmem:[%s731 + $0x8] sm:%s724]
                %736 = vst [vmem:[%s732 + $0x10] sm:%s724] %v735
                %v737 = vld [vmem:[%s731 + $0x10] sm:%s724]
                %738 = vst [vmem:[%s732 + $0x20] sm:%s724] %v737
                %v739 = vld [vmem:[%s731 + $0x18] sm:%s724]
                %740 = vst [vmem:[%s732 + $0x30] sm:%s724] %v739
              $region61: #{forward.1} parent=55 // loop_footer
                %s730 = sadd.s32 1, %s726
              $region62: #{forward.1} parent=55 // loop_footer_branch
                %725 = sbr.rel target = $region58
              $region63: #{forward.1} parent=55 // loop_exit
                _
            $region56: #{forward.1} parent=47 // pred_fallthru
              _
          $region48: #{forward.1} parent=43 // pred_fallthru
            _
          %761 = vnop
        $region44: #{forward.1} parent=31 // pred_fallthru
          _
      $region32: #{forward.1} parent=5 // pred_fallthru
        _
      %p762 = scmp.le.s32.totalorder 2, %s11
      // Predicated region
      $region79: #{forward.1} parent=5 // pred_check
        %p763 = pneg %p762
      $region80: #{forward.1} parent=5 // pred_check_branch
        %765 = sbr.rel (%p763) target = $region82
      $region81: #{forward.1} parent=5 // pred_region
        %s766 = ssub.s32 %s11, 2
        // Predicated region
        $region83: #{forward.1} parent=81 // pred_check
          %p767 = pneg %p132
        $region84: #{forward.1} parent=81 // pred_check_branch
          %769 = sbr.rel (%p767) target = $region86
        $region85: #{forward.1} parent=81 // pred_region
          %s770 = sand.u32 %s117, 1
          %s771 = sand.u32 %s117, 1
          %s772 = smul.addr %s771, 32
          %s773 = scalar_lea.vmem [#allocation6], %s772
        $region86: #{forward.1} parent=81 // pred_fallthru
          _
      $region82: #{forward.1} parent=5 // pred_fallthru
        _
    $region6: #{forward.1} parent=1 // loop_footer
      %s15 = sadd.s32 1, %s11
    $region7: #{forward.1} parent=1 // loop_footer_branch
      %10 = sbr.rel target = $region3
    $region8: #{forward.1} parent=1 // loop_exit
      _
    %774 = vsyncpa [#allocation3], 1
    %s775 = scalar_lea.sflag [#allocation3], 1
    %776 = vsyncpa %s775, 1
    %777 = vsyncpa [#allocation5], 1

</llo_original>
